<compile_context>
chip_gen: v5e
topology: v5e:2x2
jax: 0.10.0
libtpu: 0.0.40
codegen_flags: <defaults>
</compile_context>

<pallas_src>
import jax
import jax.numpy as jnp
from jax.experimental import pallas as pl
from jax.experimental.pallas import tpu as pltpu


def ffn_intermediate_kernel(x_ref, w_ref, b_ref, o_ref):
    # x_ref: (tm, K)   w_ref: (K, N)   b_ref: (1, N)   o_ref: (tm, N)
    # Feed native-dtype operands straight to the MXU; accumulate in f32.
    y = jnp.dot(x_ref[...], w_ref[...], preferred_element_type=jnp.float32)
    y = y + b_ref[...].astype(jnp.float32)

    # erf-based GELU: 0.5 * y * (1 + erf(y / sqrt(2)))  (matches PyTorch gelu)
    inv_sqrt2 = 0.7071067811865476
    act = 0.5 * y * (1.0 + jax.lax.erf(y * inv_sqrt2))

    o_ref[...] = act.astype(o_ref.dtype)


def _round_up(a, b):
    return (a + b - 1) // b * b


def ffn_layer_intermediate(x, weight, bias, *, tm=512):
    """x: (B, S, K); weight: (K, N) (PyTorch weight.T); bias: (N,).

    Returns (B, S, N) with the same dtype as x.
    """
    B, S, K = x.shape
    N = weight.shape[1]
    M = B * S

    # Effective row tile: as large as requested, but no larger than the
    # (sublane-rounded) number of rows so tiny inputs aren't over-padded.
    tm_eff = min(tm, _round_up(M, 8))
    tm_eff = _round_up(tm_eff, 8)
    M_pad = _round_up(M, tm_eff)

    x2d = x.reshape(M, K)
    if M_pad != M:
        x2d = jnp.pad(x2d, ((0, M_pad - M), (0, 0)))
    bias2d = bias.reshape(1, N)

    grid = (M_pad // tm_eff,)

    # VMEM budget: double-buffered activation + output tiles, plus the
    # (pipeline-buffered) weight and bias, plus 2x headroom. Capped so it
    # stays portable to v7x (64 MiB physical per TensorCore).
    x_bytes = jnp.dtype(x.dtype).itemsize
    w_bytes = jnp.dtype(weight.dtype).itemsize
    tile_bytes = (2 * tm_eff * K * x_bytes
                  + 2 * tm_eff * N * x_bytes
                  + 2 * K * N * w_bytes
                  + 2 * N * w_bytes)
    vmem_limit = int(min(max(2 * tile_bytes, 16 << 20), 96 << 20))

    cost = pl.CostEstimate(
        flops=2 * M_pad * K * N,
        transcendentals=M_pad * N,
        bytes_accessed=(M_pad * K + K * N + N) * x_bytes + M_pad * N * x_bytes,
    )

    out = pl.pallas_call(
        ffn_intermediate_kernel,
        out_shape=jax.ShapeDtypeStruct((M_pad, N), x.dtype),
        grid_spec=pltpu.PrefetchScalarGridSpec(
            num_scalar_prefetch=0,
            grid=grid,
            in_specs=[
                pl.BlockSpec((tm_eff, K), lambda i: (i, 0)),   # activations tile
                pl.BlockSpec((K, N), lambda i: (0, 0)),        # full weight (resident)
                pl.BlockSpec((1, N), lambda i: (0, 0)),        # bias row
            ],
            out_specs=pl.BlockSpec((tm_eff, N), lambda i: (i, 0)),
        ),
        compiler_params=pltpu.CompilerParams(
            dimension_semantics=("parallel",),
            vmem_limit_bytes=vmem_limit,
        ),
        cost_estimate=cost,
    )(x2d, weight, bias2d)

    if M_pad != M:
        out = out[:M]
    return out.reshape(B, S, N)


if __name__ == "__main__":
    # Small, MobileBERT-flavored, lane-dense shapes (multiples of 128 on the
    # lane axes so stores are unmasked).
    batch = 2
    seq = 8
    intra_bottleneck_size = 128   # config.intra_bottleneck_size
    hidden_size = 512             # config.hidden_size

    key = jax.random.PRNGKey(0)
    kx, kw, kb = jax.random.split(key, 3)

    x = jax.random.normal(kx, (batch, seq, intra_bottleneck_size), dtype=jnp.float32)
    # Deterministic "Linear" params (stored as (in, out), i.e. PyTorch weight.T)
    weight = jax.random.normal(
        kw, (intra_bottleneck_size, hidden_size), dtype=jnp.float32
    ) * (1.0 / jnp.sqrt(intra_bottleneck_size))
    bias = jax.random.normal(kb, (hidden_size,), dtype=jnp.float32) * 0.02

    out = ffn_layer_intermediate(x, weight, bias)
    out = jax.block_until_ready(out)

    # Pure-JAX reference check (same math).
    ref = x.reshape(-1, intra_bottleneck_size) @ weight + bias
    ref = 0.5 * ref * (1.0 + jax.lax.erf(ref * 0.7071067811865476))
    ref = ref.reshape(batch, seq, hidden_size)
    assert jnp.allclose(out, ref, atol=1e-4, rtol=1e-4), "mismatch vs reference"

    print("KERNEL_OK")
</pallas_src>

<mosaic_0001>
module attributes {stable_mosaic.version = 11 : i64} {
  func.func @ffn_intermediate_kernel(%arg0: i32, %arg1: memref<16x128xf32, #tpu.memory_space<vmem>>, %arg2: memref<128x512xf32, #tpu.memory_space<vmem>>, %arg3: memref<1x512xf32, #tpu.memory_space<vmem>>, %arg4: memref<16x512xf32, #tpu.memory_space<vmem>>) attributes {dimension_semantics = [#tpu.dimension_semantics<parallel>], iteration_bounds = array<i64: 1>, scalar_prefetch = 0 : i64, scratch_operands = 0 : i64, tpu.core_type = #tpu.core_type<tc>, window_params = [{transform_indices = @transform_0, window_bounds = array<i64: 16, 128>}, {pipeline_mode = #tpu.pipeline_mode<synchronous>, transform_indices = @transform_1, window_bounds = array<i64: 128, 512>}, {pipeline_mode = #tpu.pipeline_mode<synchronous>, transform_indices = @transform_2, window_bounds = array<i64: 1, 512>}, {transform_indices = @transform_3, window_bounds = array<i64: 16, 512>}]} {
    %c0 = arith.constant 0 : index
    %c0_0 = arith.constant 0 : index
    %0 = vector.load %arg1[%c0, %c0_0] : memref<16x128xf32, #tpu.memory_space<vmem>>, vector<16x128xf32>
    %c0_1 = arith.constant 0 : index
    %c0_2 = arith.constant 0 : index
    %1 = vector.load %arg2[%c0_1, %c0_2] : memref<128x512xf32, #tpu.memory_space<vmem>>, vector<128x512xf32>
    %cst = arith.constant dense<0.000000e+00> : vector<16x512xf32>
    %2 = tpu.matmul %0, %1, %cst {dimension_numbers = #tpu.dot_dimension_numbers<[1], [0], [0], [1], [0, 0, 1, 1], [], []>} : vector<16x128xf32>, vector<128x512xf32>, vector<16x512xf32> -> vector<16x512xf32>
    %c0_3 = arith.constant 0 : index
    %c0_4 = arith.constant 0 : index
    %3 = vector.load %arg3[%c0_3, %c0_4] : memref<1x512xf32, #tpu.memory_space<vmem>>, vector<1x512xf32>
    %4 = vector.broadcast %3 : vector<1x512xf32> to vector<16x512xf32>
    %5 = arith.addf %2, %4 : vector<16x512xf32>
    %cst_5 = arith.constant 5.000000e-01 : f32
    %6 = vector.broadcast %cst_5 : f32 to vector<16x512xf32>
    %7 = arith.mulf %6, %5 : vector<16x512xf32>
    %cst_6 = arith.constant 0.707106769 : f32
    %8 = vector.broadcast %cst_6 : f32 to vector<16x512xf32>
    %9 = arith.mulf %5, %8 : vector<16x512xf32>
    %10 = math.erf %9 : vector<16x512xf32>
    %cst_7 = arith.constant 1.000000e+00 : f32
    %11 = vector.broadcast %cst_7 : f32 to vector<16x512xf32>
    %12 = arith.addf %11, %10 : vector<16x512xf32>
    %13 = arith.mulf %7, %12 : vector<16x512xf32>
    %c0_8 = arith.constant 0 : index
    %c0_9 = arith.constant 0 : index
    %14 = vector.load %arg4[%c0_8, %c0_9] : memref<16x512xf32, #tpu.memory_space<vmem>>, vector<16x512xf32>
    tpu.vector_store %arg4[%c0_8, %c0_9], %13 {strides = array<i32>} : memref<16x512xf32, #tpu.memory_space<vmem>>, vector<16x512xf32>,
    return
  }
  func.func @transform_0(%arg0: i32) -> (i32, i32) {
    %c0_i32 = arith.constant 0 : i32
    %c0_i32_0 = arith.constant 0 : i32
    return %arg0, %c0_i32 : i32, i32
  }
  func.func @transform_1(%arg0: i32) -> (i32, i32) {
    %c0_i32 = arith.constant 0 : i32
    %c0_i32_0 = arith.constant 0 : i32
    %c0_i32_1 = arith.constant 0 : i32
    return %c0_i32, %c0_i32_0 : i32, i32
  }
  func.func @transform_2(%arg0: i32) -> (i32, i32) {
    %c0_i32 = arith.constant 0 : i32
    %c0_i32_0 = arith.constant 0 : i32
    %c0_i32_1 = arith.constant 0 : i32
    return %c0_i32, %c0_i32_0 : i32, i32
  }
  func.func @transform_3(%arg0: i32) -> (i32, i32) {
    %c0_i32 = arith.constant 0 : i32
    %c0_i32_0 = arith.constant 0 : i32
    return %arg0, %c0_i32 : i32, i32
  }
}

</mosaic_0001>

<llo_original>
// kernel: tpu_custom_call.1
$region0: #{tpu_custom_call.1}
  #allocation0 [shape = 'u32[]', space=smem, size = 0x4, offset = 0x4, fixed_abs, tag = 'smem constant byte address 0x4 - core index']
  #allocation1 [shape = 'u32[72,128]{1,0:T(1,128)}', space=vmem, size = 0x9000, scoped, tag = 'internal scratch']
  %s0 = inlined_call_operand.hbm [shape: f32[16,128], index: 0, kind: input, shape index: {}]
  %s1 = inlined_call_operand.hbm [shape: f32[128,512], index: 1, kind: input, shape index: {}]
  %s2 = inlined_call_operand.hbm [shape: f32[1,512], index: 2, kind: input, shape index: {}]
  %s3 = inlined_call_operand.hbm [shape: f32[16,512], index: 3, kind: output, shape index: {}]
  %s4 = sld [smem:[#allocation0]]
  $region34: #{tpu_custom_call.1} parent=0
    _
  %s6 = ssub.s32 1, %s4
  %s7 = scalar_select 0, %s6, %s4
  $region1: #{tpu_custom_call.1} parent=0
    #allocation2 [shape = 'u8[8192]{0}', space=vmem, size = 0x2000, scoped, tag = 'input window, operand 0, single buffered']
    #allocation3 [shape = 's32[1]{0}', space=sflag, size = 0x4, scoped, tag = 'scoped memory for tpu_custom_call.1']
    #allocation4 [shape = 's32[1]{0}', space=sflag, size = 0x4, scoped, tag = 'scoped memory for tpu_custom_call.1']
    #allocation5 [shape = 'u8[262144]{0}', space=vmem, size = 0x40000, scoped, tag = 'input window, operand 1, single buffered']
    #allocation6 [shape = 's32[1]{0}', space=sflag, size = 0x4, scoped, tag = 'scoped memory for tpu_custom_call.1']
    #allocation7 [shape = 'u8[2048]{0}', space=vmem, size = 0x800, scoped, tag = 'input window, operand 2, single buffered']
    #allocation8 [shape = 'u8[32768]{0}', space=vmem, size = 0x8000, scoped, tag = 'output window, operand 0, single buffered']
    %8 = vsyncpa [#allocation3], 0
    %9 = vsyncpa [#allocation6], 0
    %10 = vsyncpa [#allocation4], 0
    // Predicated region
    $region2: #{tpu_custom_call.1} parent=1 // pred_check
      _
    $region3: #{tpu_custom_call.1} parent=1 // pred_check_branch
      %12 = sbr.rel (0) target = $region5
    $region4: #{tpu_custom_call.1} parent=1 // pred_region
      %14 = vsyncadd [#allocation3], 0
      %s15 = sshll.u32 %s0, 4
      %s16 = int_to_ptr.hbm [resolvable:$true] %s15
      %s17 = sshll.u32 [#allocation2], 4
      %s18 = int_to_ptr.vmem [resolvable:$true] %s17
      %23 = dma.hbm_to_vmem [thread:$0]  %s16, 256, %s18, [#allocation3], 128, 128, 8
    $region5: #{tpu_custom_call.1} parent=1 // pred_fallthru
      _
    // Predicated region
    $region6: #{tpu_custom_call.1} parent=1 // pred_check
      _
    $region7: #{tpu_custom_call.1} parent=1 // pred_check_branch
      %25 = sbr.rel (0) target = $region9
    $region8: #{tpu_custom_call.1} parent=1 // pred_region
      %27 = vsyncadd [#allocation6], 0
      %s28 = sshll.u32 %s1, 4
      %s29 = int_to_ptr.hbm [resolvable:$true] %s28
      %s30 = sshll.u32 [#allocation5], 4
      %s31 = int_to_ptr.vmem [resolvable:$true] %s30
      %36 = dma.hbm_to_vmem [thread:$0]  %s29, 8192, %s31, [#allocation6], 512, 512, 32
    $region9: #{tpu_custom_call.1} parent=1 // pred_fallthru
      _
    // Predicated region
    $region10: #{tpu_custom_call.1} parent=1 // pred_check
      _
    $region11: #{tpu_custom_call.1} parent=1 // pred_check_branch
      %38 = sbr.rel (0) target = $region13
    $region12: #{tpu_custom_call.1} parent=1 // pred_region
      %40 = vsyncadd [#allocation6], 0
      %s42 = sshll.u32 %s2, 4
      %s43 = int_to_ptr.hbm [resolvable:$true] %s42
      %s44 = sshll.u32 [#allocation7], 4
      %s45 = int_to_ptr.vmem [resolvable:$true] %s44
      %47 = dma.hbm_to_vmem [thread:$0]  %s43, 64, %s45, [#allocation6]
    $region13: #{tpu_custom_call.1} parent=1 // pred_fallthru
      _
    // Predicated region
    $region14: #{tpu_custom_call.1} parent=1 // pred_check
      _
    $region15: #{tpu_custom_call.1} parent=1 // pred_check_branch
      %49 = sbr.rel (0) target = $region17
    $region16: #{tpu_custom_call.1} parent=1 // pred_region
      %51 = dma.done [#allocation3], 256
    $region17: #{tpu_custom_call.1} parent=1 // pred_fallthru
      _
    // Predicated region
    $region18: #{tpu_custom_call.1} parent=1 // pred_check
      _
    $region19: #{tpu_custom_call.1} parent=1 // pred_check_branch
      %53 = sbr.rel (0) target = $region21
    $region20: #{tpu_custom_call.1} parent=1 // pred_region
      %55 = dma.done [#allocation6], 8192
    $region21: #{tpu_custom_call.1} parent=1 // pred_fallthru
      _
    // Predicated region
    $region22: #{tpu_custom_call.1} parent=1 // pred_check
      _
    $region23: #{tpu_custom_call.1} parent=1 // pred_check_branch
      %57 = sbr.rel (0) target = $region25
    $region24: #{tpu_custom_call.1} parent=1 // pred_region
      %59 = dma.done [#allocation6], 64
    $region25: #{tpu_custom_call.1} parent=1 // pred_fallthru
      _
    %v60 = vld [vmem:[#allocation2] sm:$0xff]
    %v61 = vld [vmem:[#allocation2 + $0x8] sm:$0xff]
    %v62 = vld [vmem:[#allocation5] sm:$0xff]
    %v63 = vld [vmem:[#allocation5 + $0x8] sm:$0xff]
    %v64 = vld [vmem:[#allocation5 + $0x10] sm:$0xff]
    %v65 = vld [vmem:[#allocation5 + $0x18] sm:$0xff]
    %v66 = vld [vmem:[#allocation5 + $0x20] sm:$0xff]
    %v67 = vld [vmem:[#allocation5 + $0x28] sm:$0xff]
    %v68 = vld [vmem:[#allocation5 + $0x30] sm:$0xff]
    %v69 = vld [vmem:[#allocation5 + $0x38] sm:$0xff]
    %v70 = vld [vmem:[#allocation5 + $0x40] sm:$0xff]
    %v71 = vld [vmem:[#allocation5 + $0x48] sm:$0xff]
    %v72 = vld [vmem:[#allocation5 + $0x50] sm:$0xff]
    %v73 = vld [vmem:[#allocation5 + $0x58] sm:$0xff]
    %v74 = vld [vmem:[#allocation5 + $0x60] sm:$0xff]
    %v75 = vld [vmem:[#allocation5 + $0x68] sm:$0xff]
    %v76 = vld [vmem:[#allocation5 + $0x70] sm:$0xff]
    %v77 = vld [vmem:[#allocation5 + $0x78] sm:$0xff]
    %v78 = vld [vmem:[#allocation5 + $0x80] sm:$0xff]
    %v79 = vld [vmem:[#allocation5 + $0x88] sm:$0xff]
    %v80 = vld [vmem:[#allocation5 + $0x90] sm:$0xff]
    %v81 = vld [vmem:[#allocation5 + $0x98] sm:$0xff]
    %v82 = vld [vmem:[#allocation5 + $0xa0] sm:$0xff]
    %v83 = vld [vmem:[#allocation5 + $0xa8] sm:$0xff]
    %v84 = vld [vmem:[#allocation5 + $0xb0] sm:$0xff]
    %v85 = vld [vmem:[#allocation5 + $0xb8] sm:$0xff]
    %v86 = vld [vmem:[#allocation5 + $0xc0] sm:$0xff]
    %v87 = vld [vmem:[#allocation5 + $0xc8] sm:$0xff]
    %v88 = vld [vmem:[#allocation5 + $0xd0] sm:$0xff]
    %v89 = vld [vmem:[#allocation5 + $0xd8] sm:$0xff]
    %v90 = vld [vmem:[#allocation5 + $0xe0] sm:$0xff]
    %v91 = vld [vmem:[#allocation5 + $0xe8] sm:$0xff]
    %v92 = vld [vmem:[#allocation5 + $0xf0] sm:$0xff]
    %v93 = vld [vmem:[#allocation5 + $0xf8] sm:$0xff]
    %v94 = vld [vmem:[#allocation5 + $0x100] sm:$0xff]
    %v95 = vld [vmem:[#allocation5 + $0x108] sm:$0xff]
    %v96 = vld [vmem:[#allocation5 + $0x110] sm:$0xff]
    %v97 = vld [vmem:[#allocation5 + $0x118] sm:$0xff]
    %v98 = vld [vmem:[#allocation5 + $0x120] sm:$0xff]
    %v99 = vld [vmem:[#allocation5 + $0x128] sm:$0xff]
    %v100 = vld [vmem:[#allocation5 + $0x130] sm:$0xff]
    %v101 = vld [vmem:[#allocation5 + $0x138] sm:$0xff]
    %v102 = vld [vmem:[#allocation5 + $0x140] sm:$0xff]
    %v103 = vld [vmem:[#allocation5 + $0x148] sm:$0xff]
    %v104 = vld [vmem:[#allocation5 + $0x150] sm:$0xff]
    %v105 = vld [vmem:[#allocation5 + $0x158] sm:$0xff]
    %v106 = vld [vmem:[#allocation5 + $0x160] sm:$0xff]
    %v107 = vld [vmem:[#allocation5 + $0x168] sm:$0xff]
    %v108 = vld [vmem:[#allocation5 + $0x170] sm:$0xff]
    %v109 = vld [vmem:[#allocation5 + $0x178] sm:$0xff]
    %v110 = vld [vmem:[#allocation5 + $0x180] sm:$0xff]
    %v111 = vld [vmem:[#allocation5 + $0x188] sm:$0xff]
    %v112 = vld [vmem:[#allocation5 + $0x190] sm:$0xff]
    %v113 = vld [vmem:[#allocation5 + $0x198] sm:$0xff]
    %v114 = vld [vmem:[#allocation5 + $0x1a0] sm:$0xff]
    %v115 = vld [vmem:[#allocation5 + $0x1a8] sm:$0xff]
    %v116 = vld [vmem:[#allocation5 + $0x1b0] sm:$0xff]
    %v117 = vld [vmem:[#allocation5 + $0x1b8] sm:$0xff]
    %v118 = vld [vmem:[#allocation5 + $0x1c0] sm:$0xff]
    %v119 = vld [vmem:[#allocation5 + $0x1c8] sm:$0xff]
    %v120 = vld [vmem:[#allocation5 + $0x1d0] sm:$0xff]
    %v121 = vld [vmem:[#allocation5 + $0x1d8] sm:$0xff]
    %v122 = vld [vmem:[#allocation5 + $0x1e0] sm:$0xff]
    %v123 = vld [vmem:[#allocation5 + $0x1e8] sm:$0xff]
    %v124 = vld [vmem:[#allocation5 + $0x1f0] sm:$0xff]
    %v125 = vld [vmem:[#allocation5 + $0x1f8] sm:$0xff]
    %v126 = vld [vmem:[#allocation7] sm:$0xf]
    %v128 = vperm.slane %v126, 0
    %v129 = vperm.slane %v126, 1
    %v130 = vperm.slane %v126, 2
    %v131 = vperm.slane %v126, 3
    %136 = vmatpush.msra.mxu0 %v122
    %137 = vmatpush.msra.mxu0 %v118
    %138 = vmatpush.msra.mxu0 %v114
    %139 = vmatpush.msra.mxu0 %v110
    %140 = vmatpush.msra.mxu0 %v106
    %141 = vmatpush.msra.mxu0 %v102
    %142 = vmatpush.msra.mxu0 %v98
    %143 = vmatpush.msra.mxu0 %v94
    %144 = vmatpush.msra.mxu0 %v90
    %145 = vmatpush.msra.mxu0 %v86
    %146 = vmatpush.msra.mxu0 %v82
    %147 = vmatpush.msra.mxu0 %v78
    %148 = vmatpush.msra.mxu0 %v74
    %149 = vmatpush.msra.mxu0 %v70
    %150 = vmatpush.msra.mxu0 %v66
    %151 = vmatpush.msra.mxu0 %v62
    %152 = vmatmul.f32.gmra.mxu0 %v60
    %v153 = vpop.f32.mrf.mxu0
    %v154 = vadd.f32 %v128, %v153
    %155 = vmatmul.f32.gmra.mxu0 %v61
    %v156 = vpop.f32.mrf.mxu0
    %v157 = vadd.f32 %v128, %v156
    %158 = vdwg.mxu0
    %159 = vmatpush.msra.mxu0 %v123
    %160 = vmatpush.msra.mxu0 %v119
    %161 = vmatpush.msra.mxu0 %v115
    %162 = vmatpush.msra.mxu0 %v111
    %163 = vmatpush.msra.mxu0 %v107
    %164 = vmatpush.msra.mxu0 %v103
    %165 = vmatpush.msra.mxu0 %v99
    %166 = vmatpush.msra.mxu0 %v95
    %167 = vmatpush.msra.mxu0 %v91
    %168 = vmatpush.msra.mxu0 %v87
    %169 = vmatpush.msra.mxu0 %v83
    %170 = vmatpush.msra.mxu0 %v79
    %171 = vmatpush.msra.mxu0 %v75
    %172 = vmatpush.msra.mxu0 %v71
    %173 = vmatpush.msra.mxu0 %v67
    %174 = vmatpush.msra.mxu0 %v63
    %175 = vmatmul.f32.gmra.mxu0 %v60
    %v176 = vpop.f32.mrf.mxu0
    %v177 = vadd.f32 %v129, %v176
    %178 = vmatmul.f32.gmra.mxu0 %v61
    %v179 = vpop.f32.mrf.mxu0
    %v180 = vadd.f32 %v129, %v179
    %181 = vdwg.mxu0
    %182 = vmatpush.msra.mxu0 %v124
    %183 = vmatpush.msra.mxu0 %v120
    %184 = vmatpush.msra.mxu0 %v116
    %185 = vmatpush.msra.mxu0 %v112
    %186 = vmatpush.msra.mxu0 %v108
    %187 = vmatpush.msra.mxu0 %v104
    %188 = vmatpush.msra.mxu0 %v100
    %189 = vmatpush.msra.mxu0 %v96
    %190 = vmatpush.msra.mxu0 %v92
    %191 = vmatpush.msra.mxu0 %v88
    %192 = vmatpush.msra.mxu0 %v84
    %193 = vmatpush.msra.mxu0 %v80
    %194 = vmatpush.msra.mxu0 %v76
    %195 = vmatpush.msra.mxu0 %v72
    %196 = vmatpush.msra.mxu0 %v68
    %197 = vmatpush.msra.mxu0 %v64
    %198 = vmatmul.f32.gmra.mxu0 %v60
    %v199 = vpop.f32.mrf.mxu0
    %v200 = vadd.f32 %v130, %v199
    %201 = vmatmul.f32.gmra.mxu0 %v61
    %v202 = vpop.f32.mrf.mxu0
    %v203 = vadd.f32 %v130, %v202
    %204 = vdwg.mxu0
    %205 = vmatpush.msra.mxu0 %v125
    %206 = vmatpush.msra.mxu0 %v121
    %207 = vmatpush.msra.mxu0 %v117
    %208 = vmatpush.msra.mxu0 %v113
    %209 = vmatpush.msra.mxu0 %v109
    %210 = vmatpush.msra.mxu0 %v105
    %211 = vmatpush.msra.mxu0 %v101
    %212 = vmatpush.msra.mxu0 %v97
    %213 = vmatpush.msra.mxu0 %v93
    %214 = vmatpush.msra.mxu0 %v89
    %215 = vmatpush.msra.mxu0 %v85
    %216 = vmatpush.msra.mxu0 %v81
    %217 = vmatpush.msra.mxu0 %v77
    %218 = vmatpush.msra.mxu0 %v73
    %219 = vmatpush.msra.mxu0 %v69
    %220 = vmatpush.msra.mxu0 %v65
    %221 = vmatmul.f32.gmra.mxu0 %v60
    %v222 = vpop.f32.mrf.mxu0
    %v223 = vadd.f32 %v131, %v222
    %224 = vmatmul.f32.gmra.mxu0 %v61
    %v225 = vpop.f32.mrf.mxu0
    %v226 = vadd.f32 %v131, %v225
    %227 = vdwg.mxu0
    %v228 = vmul.f32 %v154, 0.5
    %v229 = vmul.f32 %v177, 0.5
    %v230 = vmul.f32 %v200, 0.5
    %v231 = vmul.f32 %v223, 0.5
    %v232 = vmul.f32 %v157, 0.5
    %v233 = vmul.f32 %v180, 0.5
    %v234 = vmul.f32 %v203, 0.5
    %v235 = vmul.f32 %v226, 0.5
    %v236 = vmul.f32 %v154, 0.70710677
    %v237 = vmul.f32 %v177, 0.70710677
    %v238 = vmul.f32 %v200, 0.70710677
    %v239 = vmul.f32 %v223, 0.70710677
    %v240 = vmul.f32 %v157, 0.70710677
    %v241 = vmul.f32 %v180, 0.70710677
    %v242 = vmul.f32 %v203, 0.70710677
    %v243 = vmul.f32 %v226, 0.70710677
    %v244 = vmul.f32 %v236, %v236
    %v245 = vmin.f32 16.0, %v244
    %v246 = vmul.f32 %v245, 2.1237322e-06
    %v247 = vadd.f32 %v246, 0.00028619796
    %v248 = vmul.f32 %v245, %v247
    %v249 = vadd.f32 %v248, 0.0036580483
    %v250 = vmul.f32 %v245, %v249
    %v251 = vadd.f32 %v250, 0.05243302
    %v252 = vmul.f32 %v245, %v251
    %v253 = vadd.f32 %v252, 0.18741608
    %v254 = vmul.f32 %v245, %v253
    %v255 = vadd.f32 %v254, 1.1283791
    %v256 = vmul.f32 %v236, %v255
    %v257 = vmul.f32 %v245, 3.8918573e-05
    %v258 = vadd.f32 %v257, 0.001143296
    %v259 = vmul.f32 %v245, %v258
    %v260 = vadd.f32 %v259, 0.014752088
    %v261 = vmul.f32 %v245, %v260
    %v262 = vadd.f32 %v261, 0.112945676
    %v263 = vmul.f32 %v245, %v262
    %v264 = vadd.f32 %v263, 0.4994258
    %v265 = vmul.f32 %v245, %v264
    %v266 = vadd.f32 %v265, 1.0
    %v267 = vrcp.pop %v266
    %v268 = vmul.f32 %v266, %v267
    %v269 = vsub.f32 1.0, %v268
    %v270 = vmul.f32 %v267, %v269
    %v271 = vadd.f32 %v267, %v270
    %vm272 = vweird.f32 %v266
    %vm273 = vweird.f32 %v267
    %vm274 = vmor %vm272, %vm273
    %v275 = vsel %vm274, %v267, %v271
    %v276 = vand.u32 2147483647, %v266
    %vm277 = vcmp.eq.f32.partialorder %v276, 8.507059e+37
    %v278 = vand.u32 %v266, 2147483648
    %v279 = vor.u32 1.1754944e-38, %v278
    %v280 = vsel %vm277, %v279, %v275
    %v281 = vmul.f32 %v256, %v280
    %v282 = vmin.f32 %v281, 1.0
    %v283 = vmax.f32 %v282, -1.0
    %v284 = vmul.f32 %v237, %v237
    %v285 = vmin.f32 16.0, %v284
    %v286 = vmul.f32 %v285, 2.1237322e-06
    %v287 = vadd.f32 %v286, 0.00028619796
    %v288 = vmul.f32 %v285, %v287
    %v289 = vadd.f32 %v288, 0.0036580483
    %v290 = vmul.f32 %v285, %v289
    %v291 = vadd.f32 %v290, 0.05243302
    %v292 = vmul.f32 %v285, %v291
    %v293 = vadd.f32 %v292, 0.18741608
    %v294 = vmul.f32 %v285, %v293
    %v295 = vadd.f32 %v294, 1.1283791
    %v296 = vmul.f32 %v237, %v295
    %v297 = vmul.f32 %v285, 3.8918573e-05
    %v298 = vadd.f32 %v297, 0.001143296
    %v299 = vmul.f32 %v285, %v298
    %v300 = vadd.f32 %v299, 0.014752088
    %v301 = vmul.f32 %v285, %v300
    %v302 = vadd.f32 %v301, 0.112945676
    %v303 = vmul.f32 %v285, %v302
    %v304 = vadd.f32 %v303, 0.4994258
    %v305 = vmul.f32 %v285, %v304
    %v306 = vadd.f32 %v305, 1.0
    %v307 = vrcp.pop %v306
    %v308 = vmul.f32 %v306, %v307
    %v309 = vsub.f32 1.0, %v308
    %v310 = vmul.f32 %v307, %v309
    %v311 = vadd.f32 %v307, %v310
    %vm312 = vweird.f32 %v306
    %vm313 = vweird.f32 %v307
    %vm314 = vmor %vm312, %vm313
    %v315 = vsel %vm314, %v307, %v311
    %v316 = vand.u32 2147483647, %v306
    %vm317 = vcmp.eq.f32.partialorder %v316, 8.507059e+37
    %v318 = vand.u32 %v306, 2147483648
    %v319 = vor.u32 1.1754944e-38, %v318
    %v320 = vsel %vm317, %v319, %v315
    %v321 = vmul.f32 %v296, %v320
    %v322 = vmin.f32 %v321, 1.0
    %v323 = vmax.f32 %v322, -1.0
    %v324 = vmul.f32 %v238, %v238
    %v325 = vmin.f32 16.0, %v324
    %v326 = vmul.f32 %v325, 2.1237322e-06
    %v327 = vadd.f32 %v326, 0.00028619796
    %v328 = vmul.f32 %v325, %v327
    %v329 = vadd.f32 %v328, 0.0036580483
    %v330 = vmul.f32 %v325, %v329
    %v331 = vadd.f32 %v330, 0.05243302
    %v332 = vmul.f32 %v325, %v331
    %v333 = vadd.f32 %v332, 0.18741608
    %v334 = vmul.f32 %v325, %v333
    %v335 = vadd.f32 %v334, 1.1283791
    %v336 = vmul.f32 %v238, %v335
    %v337 = vmul.f32 %v325, 3.8918573e-05
    %v338 = vadd.f32 %v337, 0.001143296
    %v339 = vmul.f32 %v325, %v338
    %v340 = vadd.f32 %v339, 0.014752088
    %v341 = vmul.f32 %v325, %v340
    %v342 = vadd.f32 %v341, 0.112945676
    %v343 = vmul.f32 %v325, %v342
    %v344 = vadd.f32 %v343, 0.4994258
    %v345 = vmul.f32 %v325, %v344
    %v346 = vadd.f32 %v345, 1.0
    %v347 = vrcp.pop %v346
    %v348 = vmul.f32 %v346, %v347
    %v349 = vsub.f32 1.0, %v348
    %v350 = vmul.f32 %v347, %v349
    %v351 = vadd.f32 %v347, %v350
    %vm352 = vweird.f32 %v346
    %vm353 = vweird.f32 %v347
    %vm354 = vmor %vm352, %vm353
    %v355 = vsel %vm354, %v347, %v351
    %v356 = vand.u32 2147483647, %v346
    %vm357 = vcmp.eq.f32.partialorder %v356, 8.507059e+37
    %v358 = vand.u32 %v346, 2147483648
    %v359 = vor.u32 1.1754944e-38, %v358
    %v360 = vsel %vm357, %v359, %v355
    %v361 = vmul.f32 %v336, %v360
    %v362 = vmin.f32 %v361, 1.0
    %v363 = vmax.f32 %v362, -1.0
    %v364 = vmul.f32 %v239, %v239
    %v365 = vmin.f32 16.0, %v364
    %v366 = vmul.f32 %v365, 2.1237322e-06
    %v367 = vadd.f32 %v366, 0.00028619796
    %v368 = vmul.f32 %v365, %v367
    %v369 = vadd.f32 %v368, 0.0036580483
    %v370 = vmul.f32 %v365, %v369
    %v371 = vadd.f32 %v370, 0.05243302
    %v372 = vmul.f32 %v365, %v371
    %v373 = vadd.f32 %v372, 0.18741608
    %v374 = vmul.f32 %v365, %v373
    %v375 = vadd.f32 %v374, 1.1283791
    %v376 = vmul.f32 %v239, %v375
    %v377 = vmul.f32 %v365, 3.8918573e-05
    %v378 = vadd.f32 %v377, 0.001143296
    %v379 = vmul.f32 %v365, %v378
    %v380 = vadd.f32 %v379, 0.014752088
    %v381 = vmul.f32 %v365, %v380
    %v382 = vadd.f32 %v381, 0.112945676
    %v383 = vmul.f32 %v365, %v382
    %v384 = vadd.f32 %v383, 0.4994258
    %v385 = vmul.f32 %v365, %v384
    %v386 = vadd.f32 %v385, 1.0
    %v387 = vrcp.pop %v386
    %v388 = vmul.f32 %v386, %v387
    %v389 = vsub.f32 1.0, %v388
    %v390 = vmul.f32 %v387, %v389
    %v391 = vadd.f32 %v387, %v390
    %vm392 = vweird.f32 %v386
    %vm393 = vweird.f32 %v387
    %vm394 = vmor %vm392, %vm393
    %v395 = vsel %vm394, %v387, %v391
    %v396 = vand.u32 2147483647, %v386
    %vm397 = vcmp.eq.f32.partialorder %v396, 8.507059e+37
    %v398 = vand.u32 %v386, 2147483648
    %v399 = vor.u32 1.1754944e-38, %v398
    %v400 = vsel %vm397, %v399, %v395
    %v401 = vmul.f32 %v376, %v400
    %v402 = vmin.f32 %v401, 1.0
    %v403 = vmax.f32 %v402, -1.0
    %v404 = vmul.f32 %v240, %v240
    %v405 = vmin.f32 16.0, %v404
    %v406 = vmul.f32 %v405, 2.1237322e-06
    %v407 = vadd.f32 %v406, 0.00028619796
    %v408 = vmul.f32 %v405, %v407
    %v409 = vadd.f32 %v408, 0.0036580483
    %v410 = vmul.f32 %v405, %v409
    %v411 = vadd.f32 %v410, 0.05243302
    %v412 = vmul.f32 %v405, %v411
    %v413 = vadd.f32 %v412, 0.18741608
    %v414 = vmul.f32 %v405, %v413
    %v415 = vadd.f32 %v414, 1.1283791
    %v416 = vmul.f32 %v240, %v415
    %v417 = vmul.f32 %v405, 3.8918573e-05
    %v418 = vadd.f32 %v417, 0.001143296
    %v419 = vmul.f32 %v405, %v418
    %v420 = vadd.f32 %v419, 0.014752088
    %v421 = vmul.f32 %v405, %v420
    %v422 = vadd.f32 %v421, 0.112945676
    %v423 = vmul.f32 %v405, %v422
    %v424 = vadd.f32 %v423, 0.4994258
    %v425 = vmul.f32 %v405, %v424
    %v426 = vadd.f32 %v425, 1.0
    %v427 = vrcp.pop %v426
    %v428 = vmul.f32 %v426, %v427
    %v429 = vsub.f32 1.0, %v428
    %v430 = vmul.f32 %v427, %v429
    %v431 = vadd.f32 %v427, %v430
    %vm432 = vweird.f32 %v426
    %vm433 = vweird.f32 %v427
    %vm434 = vmor %vm432, %vm433
    %v435 = vsel %vm434, %v427, %v431
    %v436 = vand.u32 2147483647, %v426
    %vm437 = vcmp.eq.f32.partialorder %v436, 8.507059e+37
    %v438 = vand.u32 %v426, 2147483648
    %v439 = vor.u32 1.1754944e-38, %v438
    %v440 = vsel %vm437, %v439, %v435
    %v441 = vmul.f32 %v416, %v440
    %v442 = vmin.f32 %v441, 1.0
    %v443 = vmax.f32 %v442, -1.0
    %v444 = vmul.f32 %v241, %v241
    %v445 = vmin.f32 16.0, %v444
    %v446 = vmul.f32 %v445, 2.1237322e-06
    %v447 = vadd.f32 %v446, 0.00028619796
    %v448 = vmul.f32 %v445, %v447
    %v449 = vadd.f32 %v448, 0.0036580483
    %v450 = vmul.f32 %v445, %v449
    %v451 = vadd.f32 %v450, 0.05243302
    %v452 = vmul.f32 %v445, %v451
    %v453 = vadd.f32 %v452, 0.18741608
    %v454 = vmul.f32 %v445, %v453
    %v455 = vadd.f32 %v454, 1.1283791
    %v456 = vmul.f32 %v241, %v455
    %v457 = vmul.f32 %v445, 3.8918573e-05
    %v458 = vadd.f32 %v457, 0.001143296
    %v459 = vmul.f32 %v445, %v458
    %v460 = vadd.f32 %v459, 0.014752088
    %v461 = vmul.f32 %v445, %v460
    %v462 = vadd.f32 %v461, 0.112945676
    %v463 = vmul.f32 %v445, %v462
    %v464 = vadd.f32 %v463, 0.4994258
    %v465 = vmul.f32 %v445, %v464
    %v466 = vadd.f32 %v465, 1.0
    %v467 = vrcp.pop %v466
    %v468 = vmul.f32 %v466, %v467
    %v469 = vsub.f32 1.0, %v468
    %v470 = vmul.f32 %v467, %v469
    %v471 = vadd.f32 %v467, %v470
    %vm472 = vweird.f32 %v466
    %vm473 = vweird.f32 %v467
    %vm474 = vmor %vm472, %vm473
    %v475 = vsel %vm474, %v467, %v471
    %v476 = vand.u32 2147483647, %v466
    %vm477 = vcmp.eq.f32.partialorder %v476, 8.507059e+37
    %v478 = vand.u32 %v466, 2147483648
    %v479 = vor.u32 1.1754944e-38, %v478
    %v480 = vsel %vm477, %v479, %v475
    %v481 = vmul.f32 %v456, %v480
    %v482 = vmin.f32 %v481, 1.0
    %v483 = vmax.f32 %v482, -1.0
    %v484 = vmul.f32 %v242, %v242
    %v485 = vmin.f32 16.0, %v484
    %v486 = vmul.f32 %v485, 2.1237322e-06
    %v487 = vadd.f32 %v486, 0.00028619796
    %v488 = vmul.f32 %v485, %v487
    %v489 = vadd.f32 %v488, 0.0036580483
    %v490 = vmul.f32 %v485, %v489
    %v491 = vadd.f32 %v490, 0.05243302
    %v492 = vmul.f32 %v485, %v491
    %v493 = vadd.f32 %v492, 0.18741608
    %v494 = vmul.f32 %v485, %v493
    %v495 = vadd.f32 %v494, 1.1283791
    %v496 = vmul.f32 %v242, %v495
    %v497 = vmul.f32 %v485, 3.8918573e-05
    %v498 = vadd.f32 %v497, 0.001143296
    %v499 = vmul.f32 %v485, %v498
    %v500 = vadd.f32 %v499, 0.014752088
    %v501 = vmul.f32 %v485, %v500
    %v502 = vadd.f32 %v501, 0.112945676
    %v503 = vmul.f32 %v485, %v502
    %v504 = vadd.f32 %v503, 0.4994258
    %v505 = vmul.f32 %v485, %v504
    %v506 = vadd.f32 %v505, 1.0
    %v507 = vrcp.pop %v506
    %v508 = vmul.f32 %v506, %v507
    %v509 = vsub.f32 1.0, %v508
    %v510 = vmul.f32 %v507, %v509
    %v511 = vadd.f32 %v507, %v510
    %vm512 = vweird.f32 %v506
    %vm513 = vweird.f32 %v507
    %vm514 = vmor %vm512, %vm513
    %v515 = vsel %vm514, %v507, %v511
    %v516 = vand.u32 2147483647, %v506
    %vm517 = vcmp.eq.f32.partialorder %v516, 8.507059e+37
    %v518 = vand.u32 %v506, 2147483648
    %v519 = vor.u32 1.1754944e-38, %v518
    %v520 = vsel %vm517, %v519, %v515
    %v521 = vmul.f32 %v496, %v520
    %v522 = vmin.f32 %v521, 1.0
    %v523 = vmax.f32 %v522, -1.0
    %v524 = vmul.f32 %v243, %v243
    %v525 = vmin.f32 16.0, %v524
    %v526 = vmul.f32 %v525, 2.1237322e-06
    %v527 = vadd.f32 %v526, 0.00028619796
    %v528 = vmul.f32 %v525, %v527
    %v529 = vadd.f32 %v528, 0.0036580483
    %v530 = vmul.f32 %v525, %v529
    %v531 = vadd.f32 %v530, 0.05243302
    %v532 = vmul.f32 %v525, %v531
    %v533 = vadd.f32 %v532, 0.18741608
    %v534 = vmul.f32 %v525, %v533
    %v535 = vadd.f32 %v534, 1.1283791
    %v536 = vmul.f32 %v243, %v535
    %v537 = vmul.f32 %v525, 3.8918573e-05
    %v538 = vadd.f32 %v537, 0.001143296
    %v539 = vmul.f32 %v525, %v538
    %v540 = vadd.f32 %v539, 0.014752088
    %v541 = vmul.f32 %v525, %v540
    %v542 = vadd.f32 %v541, 0.112945676
    %v543 = vmul.f32 %v525, %v542
    %v544 = vadd.f32 %v543, 0.4994258
    %v545 = vmul.f32 %v525, %v544
    %v546 = vadd.f32 %v545, 1.0
    %v547 = vrcp.pop %v546
    %v548 = vmul.f32 %v546, %v547
    %v549 = vsub.f32 1.0, %v548
    %v550 = vmul.f32 %v547, %v549
    %v551 = vadd.f32 %v547, %v550
    %vm552 = vweird.f32 %v546
    %vm553 = vweird.f32 %v547
    %vm554 = vmor %vm552, %vm553
    %v555 = vsel %vm554, %v547, %v551
    %v556 = vand.u32 2147483647, %v546
    %vm557 = vcmp.eq.f32.partialorder %v556, 8.507059e+37
    %v558 = vand.u32 %v546, 2147483648
    %v559 = vor.u32 1.1754944e-38, %v558
    %v560 = vsel %vm557, %v559, %v555
    %v561 = vmul.f32 %v536, %v560
    %v562 = vmin.f32 %v561, 1.0
    %v563 = vmax.f32 %v562, -1.0
    %v564 = vadd.f32 %v283, 1.0
    %v565 = vadd.f32 %v323, 1.0
    %v566 = vadd.f32 %v363, 1.0
    %v567 = vadd.f32 %v403, 1.0
    %v568 = vadd.f32 %v443, 1.0
    %v569 = vadd.f32 %v483, 1.0
    %v570 = vadd.f32 %v523, 1.0
    %v571 = vadd.f32 %v563, 1.0
    %v572 = vmul.f32 %v228, %v564
    %v573 = vmul.f32 %v229, %v565
    %v574 = vmul.f32 %v230, %v566
    %v575 = vmul.f32 %v231, %v567
    %v576 = vmul.f32 %v232, %v568
    %v577 = vmul.f32 %v233, %v569
    %v578 = vmul.f32 %v234, %v570
    %v579 = vmul.f32 %v235, %v571
    %580 = vst [vmem:[#allocation8] sm:$0xff] %v572
    %581 = vst [vmem:[#allocation8 + $0x8] sm:$0xff] %v573
    %582 = vst [vmem:[#allocation8 + $0x10] sm:$0xff] %v574
    %583 = vst [vmem:[#allocation8 + $0x18] sm:$0xff] %v575
    %584 = vst [vmem:[#allocation8 + $0x20] sm:$0xff] %v576
    %585 = vst [vmem:[#allocation8 + $0x28] sm:$0xff] %v577
    %586 = vst [vmem:[#allocation8 + $0x30] sm:$0xff] %v578
    %587 = vst [vmem:[#allocation8 + $0x38] sm:$0xff] %v579
    // Predicated region
    $region26: #{tpu_custom_call.1} parent=1 // pred_check
      _
    $region27: #{tpu_custom_call.1} parent=1 // pred_check_branch
      %589 = sbr.rel (0) target = $region29
    $region28: #{tpu_custom_call.1} parent=1 // pred_region
      %591 = vsyncadd [#allocation4], 0
      %s592 = sshll.u32 [#allocation8], 4
      %s593 = int_to_ptr.vmem [resolvable:$true] %s592
      %s594 = sshll.u32 %s3, 4
      %s595 = int_to_ptr.hbm [resolvable:$true] %s594
      %600 = dma.vmem_to_hbm [thread:$0]  %s593, 1024, %s595, [#allocation4], 512, 512, 32
    $region29: #{tpu_custom_call.1} parent=1 // pred_fallthru
      _
    // Predicated region
    $region30: #{tpu_custom_call.1} parent=1 // pred_check
      _
    $region31: #{tpu_custom_call.1} parent=1 // pred_check_branch
      %602 = sbr.rel (0) target = $region33
    $region32: #{tpu_custom_call.1} parent=1 // pred_region
      %604 = dma.done [#allocation4], 1024
    $region33: #{tpu_custom_call.1} parent=1 // pred_fallthru
      _
    %605 = vsyncpa [#allocation3], 1
    %606 = vsyncpa [#allocation6], 1
    %607 = vsyncpa [#allocation4], 1

</llo_original>
